<compile_context>
chip_gen: v5e
topology: v5e:2x2
jax: 0.10.0
libtpu: 0.0.40
codegen_flags: <defaults>
</compile_context>

<pallas_src>
import math
import functools

import jax
import jax.numpy as jnp
from jax.experimental import pallas as pl
from jax.experimental.pallas import tpu as pltpu


_GELU_C0 = math.sqrt(2.0 / math.pi)
_GELU_C1 = _GELU_C0 * 0.044715


def _mlp_kernel(x_ref, wfc_ref, bfc_ref, wproj_ref, bproj_ref, o_ref):
    # x_ref:     (tm, C)  input dtype (cast to bf16 in-kernel for the MXU)
    # wfc_ref:   (C, 4C)  bf16  = W_fc^T            (VMEM-resident, single-buffered)
    # bfc_ref:   (1, 4C)  f32
    # wproj_ref: (4C, C)  bf16  = (0.5 * W_proj)^T  (GELU's 0.5 folded in)
    # bproj_ref: (1, C)   f32
    # o_ref:     (tm, C)
    x = x_ref[...].astype(jnp.bfloat16)

    # c_fc: x @ W_fc^T + b_fc   -- plain (M,K)x(K,N) MXU matmul, f32 accumulate
    h = jnp.dot(x, wfc_ref[...], preferred_element_type=jnp.float32) + bfc_ref[...]

    # new_gelu with 0.5 folded into W_proj:  g = h * (1 + tanh(h*(c0 + c1*h^2)))
    t = jnp.tanh(h * (_GELU_C0 + _GELU_C1 * (h * h)))   # tanh -> EUP (free slot)
    g = h + h * t

    # c_proj: g @ (0.5*W_proj)^T + b_proj  (g cast to bf16 for MXU, f32 accumulate)
    out = jnp.dot(g.astype(jnp.bfloat16), wproj_ref[...],
                  preferred_element_type=jnp.float32) + bproj_ref[...]

    # dropout: identity in eval mode
    o_ref[...] = out.astype(o_ref.dtype)


def prepare_mlp_params(w_fc, b_fc, w_proj, b_proj):
    """One-time parameter prep (do at load time, NOT per forward call):
    pre-transpose, pre-cast to bf16, and fold the GELU 0.5 into W_proj."""
    wfc_t = jnp.asarray(w_fc).T.astype(jnp.bfloat16)                    # (C, 4C)
    bfc = jnp.asarray(b_fc).reshape(1, -1).astype(jnp.float32)          # (1, 4C)
    wproj_t_half = (0.5 * jnp.asarray(w_proj)).T.astype(jnp.bfloat16)   # (4C, C)
    bproj = jnp.asarray(b_proj).reshape(1, -1).astype(jnp.float32)      # (1, C)
    return wfc_t, bfc, wproj_t_half, bproj


@functools.lru_cache(maxsize=1)
def _vmem_capacity_bytes():
    try:
        cap = getattr(pltpu.get_tpu_info(), "vmem_capacity_bytes", None)
        if cap:
            return int(cap)
    except Exception:
        pass
    return 64 << 20  # conservative fallback (v7x-class VMEM)


def _pick_tiling(M, C, H, in_itemsize, out_itemsize):
    cap = _vmem_capacity_bytes()
    small_vmem = cap <= (64 << 20)                 # v7x: 64 MiB per TensorCore
    vmem_limit = (52 << 20) if small_vmem else (100 << 20)
    tm = 256 if small_vmem else 512

    # resident weights (single-buffered) + double-buffered x/out tiles
    # + f32 h/g intermediates; shrink tm until the tile fits comfortably.
    def footprint(tm_):
        weights = 2 * H * C * 2 + (H + C) * 4
        tiles = 2 * tm_ * C * (in_itemsize + out_itemsize)
        temps = 2 * tm_ * H * 4
        return weights + tiles + temps

    while tm > 8 and footprint(tm) > vmem_limit - (4 << 20):
        tm //= 2

    tm = min(tm, M)
    # give the grid >= 2 steps (when M allows) so ("parallel",) shards across
    # both v7x TensorCores; harmless on v5e/v6e (1 TC).
    if M >= 16 and pl.cdiv(M, tm) < 2:
        tm = min(M, -(-((M + 1) // 2) // 8) * 8)
    if tm != M and tm % 8 != 0:
        tm = max(8, (tm // 8) * 8)
    return tm, vmem_limit


@functools.partial(jax.jit, static_argnames=("out_dtype",))
def mlp_pallas(x, wfc_t, bfc, wproj_t_half, bproj, *, out_dtype=None):
    """x: (B, T, C) (or (M, C)); params from prepare_mlp_params.
    out_dtype defaults to x.dtype; pass jnp.bfloat16 when the consumer is bf16
    to halve output writeback traffic."""
    orig_shape = x.shape
    C = x.shape[-1]
    H = wfc_t.shape[-1]
    x2 = x.reshape(-1, C)
    M = x2.shape[0]
    out_dtype = x.dtype if out_dtype is None else jnp.dtype(out_dtype)

    tm, vmem_limit = _pick_tiling(M, C, H, x2.dtype.itemsize,
                                  jnp.dtype(out_dtype).itemsize)
    grid = (pl.cdiv(M, tm),)

    resident = pl.Buffered(1)   # grid-invariant operands: no double-buffering

    cost = pl.CostEstimate(
        flops=2 * M * C * H * 2,                      # two matmuls
        transcendentals=M * H,                        # one tanh per hidden element
        bytes_accessed=(M * C * x2.dtype.itemsize     # x
                        + 2 * H * C * 2               # both weights (bf16)
                        + (H + C) * 4                 # biases (f32)
                        + M * C * jnp.dtype(out_dtype).itemsize),
    )

    out = pl.pallas_call(
        _mlp_kernel,
        out_shape=jax.ShapeDtypeStruct((M, C), out_dtype),
        grid=grid,
        in_specs=[
            pl.BlockSpec((tm, C), lambda i: (i, 0)),                          # x tile (pipelined)
            pl.BlockSpec((C, H), lambda i: (0, 0), pipeline_mode=resident),   # W_fc^T
            pl.BlockSpec((1, H), lambda i: (0, 0), pipeline_mode=resident),   # b_fc
            pl.BlockSpec((H, C), lambda i: (0, 0), pipeline_mode=resident),   # (0.5*W_proj)^T
            pl.BlockSpec((1, C), lambda i: (0, 0), pipeline_mode=resident),   # b_proj
        ],
        out_specs=pl.BlockSpec((tm, C), lambda i: (i, 0)),
        compiler_params=pltpu.CompilerParams(
            dimension_semantics=("parallel",),
            vmem_limit_bytes=vmem_limit,
        ),
        cost_estimate=cost,
    )(x2, wfc_t, bfc, wproj_t_half, bproj)

    return out.reshape(orig_shape)


def _reference_f32(x, w_fc, b_fc, w_proj, b_proj):
    # exact PyTorch-semantics forward in f32
    xm = x.reshape(-1, x.shape[-1])
    h = xm @ w_fc.T + b_fc
    c = math.sqrt(2.0 / math.pi)
    g = 0.5 * h * (1.0 + jnp.tanh(c * (h + 0.044715 * h ** 3)))
    return (g @ w_proj.T + b_proj).reshape(x.shape)


def _reference_bf16(x, w_fc, b_fc, w_proj, b_proj):
    # mirrors the kernel numerics: bf16 matmul operands, f32 accumulation,
    # f32 reassociated GELU, 0.5 folded into W_proj.
    f32 = jnp.float32
    xm = x.reshape(-1, x.shape[-1])
    xb = xm.astype(jnp.bfloat16).astype(f32)
    wf = w_fc.T.astype(jnp.bfloat16).astype(f32)
    wp = (0.5 * w_proj).T.astype(jnp.bfloat16).astype(f32)
    h = xb @ wf + b_fc
    t = jnp.tanh(h * (_GELU_C0 + _GELU_C1 * (h * h)))
    g = h + h * t
    gb = g.astype(jnp.bfloat16).astype(f32)
    return (gb @ wp + b_proj).reshape(x.shape)


if __name__ == "__main__":
    # config: n_embd=128 (lane-dense last dim), dropout=0.0 ; input (B=2, T=16, C=128)
    B, T, C = 2, 16, 128
    H = 4 * C

    key = jax.random.PRNGKey(0)
    kx, k1, k2, k3, k4 = jax.random.split(key, 5)

    x = jax.random.normal(kx, (B, T, C), dtype=jnp.float32)

    # PyTorch nn.Linear-style init: U(-1/sqrt(fan_in), 1/sqrt(fan_in))
    bound_fc = 1.0 / math.sqrt(C)
    bound_pr = 1.0 / math.sqrt(H)
    w_fc = jax.random.uniform(k1, (H, C), jnp.float32, -bound_fc, bound_fc)
    b_fc = jax.random.uniform(k2, (H,), jnp.float32, -bound_fc, bound_fc)
    w_proj = jax.random.uniform(k3, (C, H), jnp.float32, -bound_pr, bound_pr)
    b_proj = jax.random.uniform(k4, (C,), jnp.float32, -bound_pr, bound_pr)

    # one-time param prep (transpose + bf16 cast + 0.5 fold), then forward
    params = prepare_mlp_params(w_fc, b_fc, w_proj, b_proj)
    out = mlp_pallas(x, *params)
    out = jax.block_until_ready(out)
    assert out.shape == (B, T, C)

    # tight check vs a reference with identical bf16-operand numerics
    ref_bf16 = _reference_bf16(x, w_fc, b_fc, w_proj, b_proj)
    err_tight = float(jnp.abs(out - ref_bf16).max())
    assert err_tight < 5e-3, err_tight

    # sanity check vs the full-f32 PyTorch-semantics reference (bf16 rounding tolerance)
    ref_f32 = _reference_f32(x, w_fc, b_fc, w_proj, b_proj)
    err_loose = float(jnp.abs(out - ref_f32).max())
    assert err_loose < 5e-2, err_loose

    print("KERNEL_OK")
</pallas_src>

<mosaic_0001>
module attributes {stable_mosaic.version = 11 : i64} {
  func.func @_mlp_kernel(%arg0: i32, %arg1: memref<16x128xf32, #tpu.memory_space<vmem>>, %arg2: memref<128x512xbf16, #tpu.memory_space<vmem>>, %arg3: memref<1x512xf32, #tpu.memory_space<vmem>>, %arg4: memref<512x128xbf16, #tpu.memory_space<vmem>>, %arg5: memref<1x128xf32, #tpu.memory_space<vmem>>, %arg6: memref<16x128xf32, #tpu.memory_space<vmem>>) attributes {dimension_semantics = [#tpu.dimension_semantics<parallel>], iteration_bounds = array<i64: 2>, scalar_prefetch = 0 : i64, scratch_operands = 0 : i64, tpu.core_type = #tpu.core_type<tc>, window_params = [{transform_indices = @transform_0, window_bounds = array<i64: 16, 128>}, {pipeline_mode = #tpu.pipeline_mode<synchronous>, transform_indices = @transform_1, window_bounds = array<i64: 128, 512>}, {pipeline_mode = #tpu.pipeline_mode<synchronous>, transform_indices = @transform_2, window_bounds = array<i64: 1, 512>}, {pipeline_mode = #tpu.pipeline_mode<synchronous>, transform_indices = @transform_3, window_bounds = array<i64: 512, 128>}, {pipeline_mode = #tpu.pipeline_mode<synchronous>, transform_indices = @transform_4, window_bounds = array<i64: 1, 128>}, {transform_indices = @transform_5, window_bounds = array<i64: 16, 128>}]} {
    %c0 = arith.constant 0 : index
    %c0_0 = arith.constant 0 : index
    %0 = vector.load %arg1[%c0, %c0_0] : memref<16x128xf32, #tpu.memory_space<vmem>>, vector<16x128xf32>
    %1 = arith.truncf %0 : vector<16x128xf32> to vector<16x128xbf16>
    %c0_1 = arith.constant 0 : index
    %c0_2 = arith.constant 0 : index
    %2 = vector.load %arg2[%c0_1, %c0_2] : memref<128x512xbf16, #tpu.memory_space<vmem>>, vector<128x512xbf16>
    %cst = arith.constant dense<0.000000e+00> : vector<16x512xf32>
    %3 = tpu.matmul %1, %2, %cst {dimension_numbers = #tpu.dot_dimension_numbers<[1], [0], [0], [1], [0, 0, 1, 1], [], []>} : vector<16x128xbf16>, vector<128x512xbf16>, vector<16x512xf32> -> vector<16x512xf32>
    %c0_3 = arith.constant 0 : index
    %c0_4 = arith.constant 0 : index
    %4 = vector.load %arg3[%c0_3, %c0_4] : memref<1x512xf32, #tpu.memory_space<vmem>>, vector<1x512xf32>
    %5 = vector.broadcast %4 : vector<1x512xf32> to vector<16x512xf32>
    %6 = arith.addf %3, %5 : vector<16x512xf32>
    %7 = arith.mulf %6, %6 : vector<16x512xf32>
    %cst_5 = arith.constant 0.0356774069 : f32
    %8 = vector.broadcast %cst_5 : f32 to vector<16x512xf32>
    %9 = arith.mulf %8, %7 : vector<16x512xf32>
    %cst_6 = arith.constant 0.797884583 : f32
    %10 = vector.broadcast %cst_6 : f32 to vector<16x512xf32>
    %11 = arith.addf %10, %9 : vector<16x512xf32>
    %12 = arith.mulf %6, %11 : vector<16x512xf32>
    %13 = math.tanh %12 : vector<16x512xf32>
    %14 = arith.mulf %6, %13 : vector<16x512xf32>
    %15 = arith.addf %6, %14 : vector<16x512xf32>
    %16 = arith.truncf %15 : vector<16x512xf32> to vector<16x512xbf16>
    %c0_7 = arith.constant 0 : index
    %c0_8 = arith.constant 0 : index
    %17 = vector.load %arg4[%c0_7, %c0_8] : memref<512x128xbf16, #tpu.memory_space<vmem>>, vector<512x128xbf16>
    %cst_9 = arith.constant dense<0.000000e+00> : vector<16x128xf32>
    %18 = tpu.matmul %16, %17, %cst_9 {dimension_numbers = #tpu.dot_dimension_numbers<[1], [0], [0], [1], [0, 0, 1, 1], [], []>} : vector<16x512xbf16>, vector<512x128xbf16>, vector<16x128xf32> -> vector<16x128xf32>
    %c0_10 = arith.constant 0 : index
    %c0_11 = arith.constant 0 : index
    %19 = vector.load %arg5[%c0_10, %c0_11] : memref<1x128xf32, #tpu.memory_space<vmem>>, vector<1x128xf32>
    %20 = vector.broadcast %19 : vector<1x128xf32> to vector<16x128xf32>
    %21 = arith.addf %18, %20 : vector<16x128xf32>
    %c0_12 = arith.constant 0 : index
    %c0_13 = arith.constant 0 : index
    %22 = vector.load %arg6[%c0_12, %c0_13] : memref<16x128xf32, #tpu.memory_space<vmem>>, vector<16x128xf32>
    tpu.vector_store %arg6[%c0_12, %c0_13], %21 {strides = array<i32>} : memref<16x128xf32, #tpu.memory_space<vmem>>, vector<16x128xf32>,
    return
  }
  func.func @transform_0(%arg0: i32) -> (i32, i32) {
    %c0_i32 = arith.constant 0 : i32
    %c0_i32_0 = arith.constant 0 : i32
    return %arg0, %c0_i32 : i32, i32
  }
  func.func @transform_1(%arg0: i32) -> (i32, i32) {
    %c0_i32 = arith.constant 0 : i32
    %c0_i32_0 = arith.constant 0 : i32
    %c0_i32_1 = arith.constant 0 : i32
    return %c0_i32, %c0_i32_0 : i32, i32
  }
  func.func @transform_2(%arg0: i32) -> (i32, i32) {
    %c0_i32 = arith.constant 0 : i32
    %c0_i32_0 = arith.constant 0 : i32
    %c0_i32_1 = arith.constant 0 : i32
    return %c0_i32, %c0_i32_0 : i32, i32
  }
  func.func @transform_3(%arg0: i32) -> (i32, i32) {
    %c0_i32 = arith.constant 0 : i32
    %c0_i32_0 = arith.constant 0 : i32
    %c0_i32_1 = arith.constant 0 : i32
    return %c0_i32, %c0_i32_0 : i32, i32
  }
  func.func @transform_4(%arg0: i32) -> (i32, i32) {
    %c0_i32 = arith.constant 0 : i32
    %c0_i32_0 = arith.constant 0 : i32
    %c0_i32_1 = arith.constant 0 : i32
    return %c0_i32, %c0_i32_0 : i32, i32
  }
  func.func @transform_5(%arg0: i32) -> (i32, i32) {
    %c0_i32 = arith.constant 0 : i32
    %c0_i32_0 = arith.constant 0 : i32
    return %arg0, %c0_i32 : i32, i32
  }
}

</mosaic_0001>

<llo_original>
// kernel: mlp_pallas.1
$region0: #{mlp_pallas.1}
  #allocation0 [shape = 'u32[]', space=smem, size = 0x4, offset = 0x4, fixed_abs, tag = 'smem constant byte address 0x4 - core index']
  #allocation1 [shape = 'u32[72,128]{1,0:T(1,128)}', space=vmem, size = 0x9000, scoped, tag = 'internal scratch']
  %s0 = inlined_call_operand.hbm [shape: f32[32,128], index: 0, kind: input, shape index: {}]
  %s1 = inlined_call_operand.hbm [shape: bf16[128,512], index: 1, kind: input, shape index: {}]
  %s2 = inlined_call_operand.hbm [shape: f32[1,512], index: 2, kind: input, shape index: {}]
  %s3 = inlined_call_operand.hbm [shape: bf16[512,128], index: 3, kind: input, shape index: {}]
  %s4 = inlined_call_operand.vmem [shape: f32[1,128], index: 4, kind: input, shape index: {}]
  %s5 = inlined_call_operand.hbm [shape: f32[32,128], index: 5, kind: output, shape index: {}]
  %s6 = sld [smem:[#allocation0]]
  $region69: #{mlp_pallas.1} parent=0
    _
  %s8 = ssub.s32 1, %s6
  %s9 = scalar_select 0, %s8, %s6
  $region1: #{mlp_pallas.1} parent=0
    #allocation2 [shape = 'u8[16384]{0}', space=vmem, size = 0x4000, scoped, tag = 'input window, operand 0']
    #allocation3 [shape = 's32[2]{0}', space=sflag, size = 0x8, scoped, tag = 'scoped memory for mlp_pallas.1']
    #allocation4 [shape = 's32[2]{0}', space=sflag, size = 0x8, scoped, tag = 'scoped memory for mlp_pallas.1']
    #allocation5 [shape = 'u8[131072]{0}', space=vmem, size = 0x20000, scoped, tag = 'input window, operand 1, single buffered']
    #allocation6 [shape = 's32[1]{0}', space=sflag, size = 0x4, scoped, tag = 'scoped memory for mlp_pallas.1']
    #allocation7 [shape = 'u8[2048]{0}', space=vmem, size = 0x800, scoped, tag = 'input window, operand 2, single buffered']
    #allocation8 [shape = 'u8[131072]{0}', space=vmem, size = 0x20000, scoped, tag = 'input window, operand 3, single buffered']
    #allocation9 [shape = 's32[1]{0}', space=sflag, size = 0x4, scoped, tag = 'scoped memory for mlp_pallas.1']
    #allocation10 [shape = 'u8[16384]{0}', space=vmem, size = 0x4000, scoped, tag = 'output window, operand 0']
    %10 = vsyncpa [#allocation3], 0
    %s11 = scalar_lea.sflag [#allocation3], 1
    %12 = vsyncpa %s11, 0
    %13 = vsyncpa [#allocation6], 0
    %14 = vsyncpa [#allocation9], 0
    %15 = vsyncpa [#allocation4], 0
    %s16 = scalar_lea.sflag [#allocation4], 1
    %17 = vsyncpa %s16, 0
    loop: start=0, step=1, limit=4
    $region2: #{mlp_pallas.1} parent=1 // loop_pre_header
      _
    $region3: #{mlp_pallas.1} parent=1 // loop_header
      %s19 = sphi 0, %s23
      %p20 = scmp.ge.s32.totalorder %s19, 4
      %s29 = sphi 0, %s31
      %s32 = sphi 0, %s29
      %s33 = sphi 0, %s32
      %s49 = sphi 0, %s33
      %s53 = sphi 0, %s53
      %s55 = sphi 0, %s53
      %s56 = sphi 0, %s55
      %s70 = sphi 0, %s56
      %s74 = sphi 0, %s74
      %s76 = sphi 0, %s74
      %s77 = sphi 0, %s76
      %s91 = sphi 0, %s77
      %s95 = sphi 0, %s95
      %s97 = sphi 0, %s95
      %s98 = sphi 0, %s97
      %s112 = sphi 0, %s98
      %s116 = sphi 0, %s116
      %s118 = sphi 0, %s116
      %s119 = sphi 0, %s118
      %s133 = sphi 0, %s119
      %s139 = sphi 0, %s141
      %s142 = sphi 0, %s139
      %s143 = sphi 0, %s142
      %s159 = sphi 0, %s143
    $region4: #{mlp_pallas.1} parent=1 // loop_header_branch
      %22 = sbr.rel (%p20) target = $region8
    $region5: #{mlp_pallas.1} parent=1 // loop_body
      %s24 = ssub.s32 %s19, 1
      %s25 = ssub.s32 %s19, 2
      %s26 = sadd.s32 %s19, 1
      %s27 = ssub.s32 %s19, %s26
      %p28 = scmp.eq.s32.totalorder %s27, 0
      %s30 = sadd.s32 %s29, 1
      %s31 = scalar_select %p28, %s29, %s30
      %p34 = pneg %p28
      %p35 = scmp.eq.s32.totalorder %s19, 1
      %p36 = por %p34, %p35
      %p37 = scmp.ne.s32.totalorder %s29, %s32
      %p38 = scmp.eq.s32.totalorder %s19, 0
      %p39 = por %p37, %p38
      %p40 = scmp.ne.s32.totalorder %s29, %s32
      %p41 = scmp.eq.s32.totalorder %s24, 1
      %p42 = por %p40, %p41
      %p43 = scmp.ne.s32.totalorder %s32, %s33
      %p44 = scmp.eq.s32.totalorder %s24, 0
      %p45 = por %p43, %p44
      %p46 = scmp.ne.s32.totalorder %s32, %s33
      %p47 = scmp.eq.s32.totalorder %s25, 1
      %p48 = por %p46, %p47
      %p50 = scmp.ne.s32.totalorder %s33, %s49
      %p51 = scmp.eq.s32.totalorder %s25, 0
      %p52 = por %p50, %p51
      %s54 = sadd.s32 %s53, 1
      %p57 = scmp.eq.s32.totalorder %s19, 1
      %p58 = scmp.ne.s32.totalorder %s53, %s55
      %p59 = scmp.eq.s32.totalorder %s19, 0
      %p60 = por %p58, %p59
      %p61 = scmp.ne.s32.totalorder %s53, %s55
      %p62 = scmp.eq.s32.totalorder %s24, 1
      %p63 = por %p61, %p62
      %p64 = scmp.ne.s32.totalorder %s55, %s56
      %p65 = scmp.eq.s32.totalorder %s24, 0
      %p66 = por %p64, %p65
      %p67 = scmp.ne.s32.totalorder %s55, %s56
      %p68 = scmp.eq.s32.totalorder %s25, 1
      %p69 = por %p67, %p68
      %p71 = scmp.ne.s32.totalorder %s56, %s70
      %p72 = scmp.eq.s32.totalorder %s25, 0
      %p73 = por %p71, %p72
      %s75 = sadd.s32 %s74, 1
      %p78 = scmp.eq.s32.totalorder %s19, 1
      %p79 = scmp.ne.s32.totalorder %s74, %s76
      %p80 = scmp.eq.s32.totalorder %s19, 0
      %p81 = por %p79, %p80
      %p82 = scmp.ne.s32.totalorder %s74, %s76
      %p83 = scmp.eq.s32.totalorder %s24, 1
      %p84 = por %p82, %p83
      %p85 = scmp.ne.s32.totalorder %s76, %s77
      %p86 = scmp.eq.s32.totalorder %s24, 0
      %p87 = por %p85, %p86
      %p88 = scmp.ne.s32.totalorder %s76, %s77
      %p89 = scmp.eq.s32.totalorder %s25, 1
      %p90 = por %p88, %p89
      %p92 = scmp.ne.s32.totalorder %s77, %s91
      %p93 = scmp.eq.s32.totalorder %s25, 0
      %p94 = por %p92, %p93
      %s96 = sadd.s32 %s95, 1
      %p99 = scmp.eq.s32.totalorder %s19, 1
      %p100 = scmp.ne.s32.totalorder %s95, %s97
      %p101 = scmp.eq.s32.totalorder %s19, 0
      %p102 = por %p100, %p101
      %p103 = scmp.ne.s32.totalorder %s95, %s97
      %p104 = scmp.eq.s32.totalorder %s24, 1
      %p105 = por %p103, %p104
      %p106 = scmp.ne.s32.totalorder %s97, %s98
      %p107 = scmp.eq.s32.totalorder %s24, 0
      %p108 = por %p106, %p107
      %p109 = scmp.ne.s32.totalorder %s97, %s98
      %p110 = scmp.eq.s32.totalorder %s25, 1
      %p111 = por %p109, %p110
      %p113 = scmp.ne.s32.totalorder %s98, %s112
      %p114 = scmp.eq.s32.totalorder %s25, 0
      %p115 = por %p113, %p114
      %s117 = sadd.s32 %s116, 1
      %p120 = scmp.eq.s32.totalorder %s19, 1
      %p121 = scmp.ne.s32.totalorder %s116, %s118
      %p122 = scmp.eq.s32.totalorder %s19, 0
      %p123 = por %p121, %p122
      %p124 = scmp.ne.s32.totalorder %s116, %s118
      %p125 = scmp.eq.s32.totalorder %s24, 1
      %p126 = por %p124, %p125
      %p127 = scmp.ne.s32.totalorder %s118, %s119
      %p128 = scmp.eq.s32.totalorder %s24, 0
      %p129 = por %p127, %p128
      %p130 = scmp.ne.s32.totalorder %s118, %s119
      %p131 = scmp.eq.s32.totalorder %s25, 1
      %p132 = por %p130, %p131
      %p134 = scmp.ne.s32.totalorder %s119, %s133
      %p135 = scmp.eq.s32.totalorder %s25, 0
      %p136 = por %p134, %p135
      %s137 = ssub.s32 %s19, %s26
      %p138 = scmp.eq.s32.totalorder %s137, 0
      %s140 = sadd.s32 %s139, 1
      %s141 = scalar_select %p138, %s139, %s140
      %p144 = pneg %p138
      %p145 = scmp.eq.s32.totalorder %s19, 1
      %p146 = por %p144, %p145
      %p147 = scmp.ne.s32.totalorder %s139, %s142
      %p148 = scmp.eq.s32.totalorder %s19, 0
      %p149 = por %p147, %p148
      %p150 = scmp.ne.s32.totalorder %s139, %s142
      %p151 = scmp.eq.s32.totalorder %s24, 1
      %p152 = por %p150, %p151
      %p153 = scmp.ne.s32.totalorder %s142, %s143
      %p154 = scmp.eq.s32.totalorder %s24, 0
      %p155 = por %p153, %p154
      %p156 = scmp.ne.s32.totalorder %s142, %s143
      %p157 = scmp.eq.s32.totalorder %s25, 1
      %p158 = por %p156, %p157
      %p160 = scmp.ne.s32.totalorder %s143, %s159
      %p161 = scmp.eq.s32.totalorder %s25, 0
      %p162 = por %p160, %p161
      %p163 = scmp.le.s32.totalorder 1, %s19
      %p164 = scmp.lt.s32.totalorder %s19, 3
      %p165 = pnand %p163, %p164
      %p166 = pneg %p165
      // Predicated region
      $region9: #{mlp_pallas.1} parent=5 // pred_check
        _
      $region10: #{mlp_pallas.1} parent=5 // pred_check_branch
        %168 = sbr.rel (%p165) target = $region12
      $region11: #{mlp_pallas.1} parent=5 // pred_region
        %s169 = ssub.s32 %s19, 1
        // Predicated region
        $region13: #{mlp_pallas.1} parent=11 // pred_check
          %p170 = pneg %p66
        $region14: #{mlp_pallas.1} parent=11 // pred_check_branch
          %172 = sbr.rel (%p170) target = $region16
        $region15: #{mlp_pallas.1} parent=11 // pred_region
          %174 = vsyncadd [#allocation6], 0
          %s175 = sshll.u32 %s1, 4
          %s176 = int_to_ptr.hbm [resolvable:$true] %s175
          %s177 = sshll.u32 [#allocation5], 4
          %s178 = int_to_ptr.vmem [resolvable:$true] %s177
          %183 = dma.hbm_to_vmem [thread:$0]  %s176, 4096, %s178, [#allocation6], 256, 256, 16
        $region16: #{mlp_pallas.1} parent=11 // pred_fallthru
          _
        // Predicated region
        $region17: #{mlp_pallas.1} parent=11 // pred_check
          %p184 = pneg %p87
        $region18: #{mlp_pallas.1} parent=11 // pred_check_branch
          %186 = sbr.rel (%p184) target = $region20
        $region19: #{mlp_pallas.1} parent=11 // pred_region
          %188 = vsyncadd [#allocation6], 0
          %s190 = sshll.u32 %s2, 4
          %s191 = int_to_ptr.hbm [resolvable:$true] %s190
          %s192 = sshll.u32 [#allocation7], 4
          %s193 = int_to_ptr.vmem [resolvable:$true] %s192
          %195 = dma.hbm_to_vmem [thread:$0]  %s191, 64, %s193, [#allocation6]
        $region20: #{mlp_pallas.1} parent=11 // pred_fallthru
          _
        // Predicated region
        $region21: #{mlp_pallas.1} parent=11 // pred_check
          %p196 = pneg %p108
        $region22: #{mlp_pallas.1} parent=11 // pred_check_branch
          %198 = sbr.rel (%p196) target = $region24
        $region23: #{mlp_pallas.1} parent=11 // pred_region
          %200 = vsyncadd [#allocation9], 0
          %s201 = sshll.u32 %s3, 4
          %s202 = int_to_ptr.hbm [resolvable:$true] %s201
          %s203 = sshll.u32 [#allocation8], 4
          %s204 = int_to_ptr.vmem [resolvable:$true] %s203
          %209 = dma.hbm_to_vmem [thread:$0]  %s202, 4096, %s204, [#allocation9], 64, 64, 4
        $region24: #{mlp_pallas.1} parent=11 // pred_fallthru
          _
        // Predicated region
        $region25: #{mlp_pallas.1} parent=11 // pred_check
          %p210 = pneg %p129
        $region26: #{mlp_pallas.1} parent=11 // pred_check_branch
          %212 = sbr.rel (%p210) target = $region28
        $region27: #{mlp_pallas.1} parent=11 // pred_region
          _
        $region28: #{mlp_pallas.1} parent=11 // pred_fallthru
          _
      $region12: #{mlp_pallas.1} parent=5 // pred_fallthru
        _
      %p213 = scmp.lt.s32.totalorder %s19, 2
      // Predicated region
      $region29: #{mlp_pallas.1} parent=5 // pred_check
        %p214 = pneg %p213
      $region30: #{mlp_pallas.1} parent=5 // pred_check_branch
        %216 = sbr.rel (%p214) target = $region32
      $region31: #{mlp_pallas.1} parent=5 // pred_region
        // Predicated region
        $region33: #{mlp_pallas.1} parent=31 // pred_check
          %p217 = pneg %p39
        $region34: #{mlp_pallas.1} parent=31 // pred_check_branch
          %219 = sbr.rel (%p217) target = $region36
        $region35: #{mlp_pallas.1} parent=31 // pred_region
          %s220 = sand.u32 %s29, 1
          %s221 = scalar_lea.sflag [#allocation3], %s220
          %s222 = sand.u32 %s29, 1
          %s223 = smul.addr %s222, 16
          %s224 = scalar_lea.vmem [#allocation2], %s223
          %s225 = smul.u32 2, %s19
          %227 = vsyncadd %s221, 0
          %s228 = smul.addr %s225, 8
          %s229 = scalar_lea.hbm %s0, %s228
          %s230 = sshll.u32 %s229, 4
          %s231 = int_to_ptr.hbm [resolvable:$true] %s230
          %s232 = sshll.u32 %s224, 4
          %s233 = int_to_ptr.vmem [resolvable:$true] %s232
          %238 = dma.hbm_to_vmem [thread:$0]  %s231, 256, %s233, %s221, 128, 128, 8
        $region36: #{mlp_pallas.1} parent=31 // pred_fallthru
          _
      $region32: #{mlp_pallas.1} parent=5 // pred_fallthru
        _
      %p239 = scmp.le.s32.totalorder 1, %s19
      %p240 = scmp.lt.s32.totalorder %s19, 3
      %p241 = pnand %p239, %p240
      %p242 = pneg %p241
      // Predicated region
      $region37: #{mlp_pallas.1} parent=5 // pred_check
        _
      $region38: #{mlp_pallas.1} parent=5 // pred_check_branch
        %244 = sbr.rel (%p241) target = $region40
      $region39: #{mlp_pallas.1} parent=5 // pred_region
        %s245 = ssub.s32 %s19, 1
        %s246 = sand.u32 %s32, 1
        %s247 = scalar_lea.sflag [#allocation3], %s246
        %s248 = sand.u32 %s32, 1
        %s249 = smul.addr %s248, 16
        %s250 = scalar_lea.vmem [#allocation2], %s249
        // Predicated region
        $region41: #{mlp_pallas.1} parent=39 // pred_check
          %p251 = pneg %p45
        $region42: #{mlp_pallas.1} parent=39 // pred_check_branch
          %253 = sbr.rel (%p251) target = $region44
        $region43: #{mlp_pallas.1} parent=39 // pred_region
          %255 = dma.done %s247, 256
        $region44: #{mlp_pallas.1} parent=39 // pred_fallthru
          _
        // Predicated region
        $region45: #{mlp_pallas.1} parent=39 // pred_check
          %p256 = pneg %p66
        $region46: #{mlp_pallas.1} parent=39 // pred_check_branch
          %258 = sbr.rel (%p256) target = $region48
        $region47: #{mlp_pallas.1} parent=39 // pred_region
          %260 = dma.done [#allocation6], 4096
        $region48: #{mlp_pallas.1} parent=39 // pred_fallthru
          _
        // Predicated region
        $region49: #{mlp_pallas.1} parent=39 // pred_check
          %p261 = pneg %p87
        $region50: #{mlp_pallas.1} parent=39 // pred_check_branch
          %263 = sbr.rel (%p261) target = $region52
        $region51: #{mlp_pallas.1} parent=39 // pred_region
          %265 = dma.done [#allocation6], 64
        $region52: #{mlp_pallas.1} parent=39 // pred_fallthru
          _
        // Predicated region
        $region53: #{mlp_pallas.1} parent=39 // pred_check
          %p266 = pneg %p108
        $region54: #{mlp_pallas.1} parent=39 // pred_check_branch
          %268 = sbr.rel (%p266) target = $region56
        $region55: #{mlp_pallas.1} parent=39 // pred_region
          %270 = dma.done [#allocation9], 4096
        $region56: #{mlp_pallas.1} parent=39 // pred_fallthru
          _
        %s271 = sand.u32 %s32, 1
        %s272 = scalar_lea.sflag [#allocation3], %s271
        %s273 = sand.u32 %s32, 1
        %s274 = smul.addr %s273, 16
        %s275 = scalar_lea.vmem [#allocation2], %s274
        %p276 = pneg %p45
        %p277 = pneg %p42
        %p278 = pneg %p66
        %p279 = pneg %p63
        %p280 = pneg %p87
        %p281 = pneg %p84
        %p282 = pneg %p108
        %p283 = pneg %p105
        %p284 = pneg %p129
        %p285 = pneg %p126
        %p286 = pneg %p155
        %p287 = pneg %p152
        %s288 = sand.u32 %s142, 1
        %s289 = scalar_lea.sflag [#allocation4], %s288
        %s290 = sand.u32 %s142, 1
        %s291 = smul.addr %s290, 16
        %s292 = scalar_lea.vmem [#allocation10], %s291
        %s293 = smul.u32 2, %s24
        %s294 = smul.u32 2, %s24
        %v295 = vld [vmem:[%s250] sm:$0xff]
        %v296 = vld [vmem:[%s250 + $0x8] sm:$0xff]
        %v297 = vpack.c.bf16 %v296, %v295
        %v298 = vld [vmem:[#allocation5] sm:$0xff]
        %v299 = vld [vmem:[#allocation5 + $0x8] sm:$0xff]
        %v300 = vld [vmem:[#allocation5 + $0x10] sm:$0xff]
        %v301 = vld [vmem:[#allocation5 + $0x18] sm:$0xff]
        %v302 = vld [vmem:[#allocation5 + $0x20] sm:$0xff]
        %v303 = vld [vmem:[#allocation5 + $0x28] sm:$0xff]
        %v304 = vld [vmem:[#allocation5 + $0x30] sm:$0xff]
        %v305 = vld [vmem:[#allocation5 + $0x38] sm:$0xff]
        %v306 = vld [vmem:[#allocation5 + $0x40] sm:$0xff]
        %v307 = vld [vmem:[#allocation5 + $0x48] sm:$0xff]
        %v308 = vld [vmem:[#allocation5 + $0x50] sm:$0xff]
        %v309 = vld [vmem:[#allocation5 + $0x58] sm:$0xff]
        %v310 = vld [vmem:[#allocation5 + $0x60] sm:$0xff]
        %v311 = vld [vmem:[#allocation5 + $0x68] sm:$0xff]
        %v312 = vld [vmem:[#allocation5 + $0x70] sm:$0xff]
        %v313 = vld [vmem:[#allocation5 + $0x78] sm:$0xff]
        %v314 = vld [vmem:[#allocation5 + $0x80] sm:$0xff]
        %v315 = vld [vmem:[#allocation5 + $0x88] sm:$0xff]
        %v316 = vld [vmem:[#allocation5 + $0x90] sm:$0xff]
        %v317 = vld [vmem:[#allocation5 + $0x98] sm:$0xff]
        %v318 = vld [vmem:[#allocation5 + $0xa0] sm:$0xff]
        %v319 = vld [vmem:[#allocation5 + $0xa8] sm:$0xff]
        %v320 = vld [vmem:[#allocation5 + $0xb0] sm:$0xff]
        %v321 = vld [vmem:[#allocation5 + $0xb8] sm:$0xff]
        %v322 = vld [vmem:[#allocation5 + $0xc0] sm:$0xff]
        %v323 = vld [vmem:[#allocation5 + $0xc8] sm:$0xff]
        %v324 = vld [vmem:[#allocation5 + $0xd0] sm:$0xff]
        %v325 = vld [vmem:[#allocation5 + $0xd8] sm:$0xff]
        %v326 = vld [vmem:[#allocation5 + $0xe0] sm:$0xff]
        %v327 = vld [vmem:[#allocation5 + $0xe8] sm:$0xff]
        %v328 = vld [vmem:[#allocation5 + $0xf0] sm:$0xff]
        %v329 = vld [vmem:[#allocation5 + $0xf8] sm:$0xff]
        %v330 = vld [vmem:[#allocation7] sm:$0xf]
        %v332 = vperm.slane %v330, 0
        %v333 = vperm.slane %v330, 1
        %v334 = vperm.slane %v330, 2
        %v335 = vperm.slane %v330, 3
        %v372 = vunpack.c.l.b16 %v298
        %v373 = vunpack.c.h.b16 %v298
        %v374 = vunpack.c.l.b16 %v299
        %v375 = vunpack.c.h.b16 %v299
        %v376 = vunpack.c.l.b16 %v300
        %v377 = vunpack.c.h.b16 %v300
        %v378 = vunpack.c.l.b16 %v301
        %v379 = vunpack.c.h.b16 %v301
        %v380 = vunpack.c.l.b16 %v302
        %v381 = vunpack.c.h.b16 %v302
        %v382 = vunpack.c.l.b16 %v303
        %v383 = vunpack.c.h.b16 %v303
        %v384 = vunpack.c.l.b16 %v304
        %v385 = vunpack.c.h.b16 %v304
        %v386 = vunpack.c.l.b16 %v305
        %v387 = vunpack.c.h.b16 %v305
        %v388 = vunpack.c.l.b16 %v306
        %v389 = vunpack.c.h.b16 %v306
        %v390 = vunpack.c.l.b16 %v307
        %v391 = vunpack.c.h.b16 %v307
        %v392 = vunpack.c.l.b16 %v308
        %v393 = vunpack.c.h.b16 %v308
        %v394 = vunpack.c.l.b16 %v309
        %v395 = vunpack.c.h.b16 %v309
        %v396 = vunpack.c.l.b16 %v310
        %v397 = vunpack.c.h.b16 %v310
        %v398 = vunpack.c.l.b16 %v311
        %v399 = vunpack.c.h.b16 %v311
        %v400 = vunpack.c.l.b16 %v312
        %v401 = vunpack.c.h.b16 %v312
        %v402 = vunpack.c.l.b16 %v313
        %v403 = vunpack.c.h.b16 %v313
        %v404 = vunpack.c.l.b16 %v314
        %v405 = vunpack.c.h.b16 %v314
        %v406 = vunpack.c.l.b16 %v315
        %v407 = vunpack.c.h.b16 %v315
        %v408 = vunpack.c.l.b16 %v316
        %v409 = vunpack.c.h.b16 %v316
        %v410 = vunpack.c.l.b16 %v317
        %v411 = vunpack.c.h.b16 %v317
        %v412 = vunpack.c.l.b16 %v318
        %v413 = vunpack.c.h.b16 %v318
        %v414 = vunpack.c.l.b16 %v319
        %v415 = vunpack.c.h.b16 %v319
        %v416 = vunpack.c.l.b16 %v320
        %v417 = vunpack.c.h.b16 %v320
        %v418 = vunpack.c.l.b16 %v321
        %v419 = vunpack.c.h.b16 %v321
        %v420 = vunpack.c.l.b16 %v322
        %v421 = vunpack.c.h.b16 %v322
        %v422 = vunpack.c.l.b16 %v323
        %v423 = vunpack.c.h.b16 %v323
        %v424 = vunpack.c.l.b16 %v324
        %v425 = vunpack.c.h.b16 %v324
        %v426 = vunpack.c.l.b16 %v325
        %v427 = vunpack.c.h.b16 %v325
        %v428 = vunpack.c.l.b16 %v326
        %v429 = vunpack.c.h.b16 %v326
        %v430 = vunpack.c.l.b16 %v327
        %v431 = vunpack.c.h.b16 %v327
        %v432 = vunpack.c.l.b16 %v328
        %v433 = vunpack.c.h.b16 %v328
        %v434 = vunpack.c.l.b16 %v329
        %v435 = vunpack.c.h.b16 %v329
        %v436 = vpack.c.b16 %v376, %v372
        %v437 = vpack.c.b16 %v377, %v373
        %v438 = vpack.c.b16 %v378, %v374
        %v439 = vpack.c.b16 %v379, %v375
        %v440 = vpack.c.b16 %v384, %v380
        %v441 = vpack.c.b16 %v385, %v381
        %v442 = vpack.c.b16 %v386, %v382
        %v443 = vpack.c.b16 %v387, %v383
        %v444 = vpack.c.b16 %v392, %v388
        %v445 = vpack.c.b16 %v393, %v389
        %v446 = vpack.c.b16 %v394, %v390
        %v447 = vpack.c.b16 %v395, %v391
        %v448 = vpack.c.b16 %v400, %v396
        %v449 = vpack.c.b16 %v401, %v397
        %v450 = vpack.c.b16 %v402, %v398
        %v451 = vpack.c.b16 %v403, %v399
        %v452 = vpack.c.b16 %v408, %v404
        %v453 = vpack.c.b16 %v409, %v405
        %v454 = vpack.c.b16 %v410, %v406
        %v455 = vpack.c.b16 %v411, %v407
        %v456 = vpack.c.b16 %v416, %v412
        %v457 = vpack.c.b16 %v417, %v413
        %v458 = vpack.c.b16 %v418, %v414
        %v459 = vpack.c.b16 %v419, %v415
        %v460 = vpack.c.b16 %v424, %v420
        %v461 = vpack.c.b16 %v425, %v421
        %v462 = vpack.c.b16 %v426, %v422
        %v463 = vpack.c.b16 %v427, %v423
        %v464 = vpack.c.b16 %v432, %v428
        %v465 = vpack.c.b16 %v433, %v429
        %v466 = vpack.c.b16 %v434, %v430
        %v467 = vpack.c.b16 %v435, %v431
        %500 = vmatpush.bf16.msra.mxu0 %v464
        %501 = vmatpush.bf16.msra.mxu0 %v460
        %502 = vmatpush.bf16.msra.mxu0 %v456
        %503 = vmatpush.bf16.msra.mxu0 %v452
        %504 = vmatpush.bf16.msra.mxu0 %v448
        %505 = vmatpush.bf16.msra.mxu0 %v444
        %506 = vmatpush.bf16.msra.mxu0 %v440
        %507 = vmatpush.bf16.msra.mxu0 %v436
        %508 = vmatmul.bf16.gmra.mxu0 %v297
        %v509 = vpop.f32.mrf.mxu0
        %v510 = vadd.f32 %v332, %v509
        %v511 = vpop.f32.mrf.mxu0
        %v512 = vadd.f32 %v332, %v511
        %513 = vdwg.mxu0
        %514 = vmatpush.bf16.msra.mxu0 %v465
        %515 = vmatpush.bf16.msra.mxu0 %v461
        %516 = vmatpush.bf16.msra.mxu0 %v457
        %517 = vmatpush.bf16.msra.mxu0 %v453
        %518 = vmatpush.bf16.msra.mxu0 %v449
        %519 = vmatpush.bf16.msra.mxu0 %v445
        %520 = vmatpush.bf16.msra.mxu0 %v441
        %521 = vmatpush.bf16.msra.mxu0 %v437
        %522 = vmatmul.bf16.gmra.mxu0 %v297
        %v523 = vpop.f32.mrf.mxu0
        %v524 = vadd.f32 %v333, %v523
        %v525 = vpop.f32.mrf.mxu0
        %v526 = vadd.f32 %v333, %v525
        %527 = vdwg.mxu0
        %528 = vmatpush.bf16.msra.mxu0 %v466
        %529 = vmatpush.bf16.msra.mxu0 %v462
        %530 = vmatpush.bf16.msra.mxu0 %v458
        %531 = vmatpush.bf16.msra.mxu0 %v454
        %532 = vmatpush.bf16.msra.mxu0 %v450
        %533 = vmatpush.bf16.msra.mxu0 %v446
        %534 = vmatpush.bf16.msra.mxu0 %v442
        %535 = vmatpush.bf16.msra.mxu0 %v438
        %536 = vmatmul.bf16.gmra.mxu0 %v297
        %v537 = vpop.f32.mrf.mxu0
        %v538 = vadd.f32 %v334, %v537
        %v539 = vpop.f32.mrf.mxu0
        %v540 = vadd.f32 %v334, %v539
        %541 = vdwg.mxu0
        %542 = vmatpush.bf16.msra.mxu0 %v467
        %543 = vmatpush.bf16.msra.mxu0 %v463
        %544 = vmatpush.bf16.msra.mxu0 %v459
        %545 = vmatpush.bf16.msra.mxu0 %v455
        %546 = vmatpush.bf16.msra.mxu0 %v451
        %547 = vmatpush.bf16.msra.mxu0 %v447
        %548 = vmatpush.bf16.msra.mxu0 %v443
        %549 = vmatpush.bf16.msra.mxu0 %v439
        %550 = vmatmul.bf16.gmra.mxu0 %v297
        %v551 = vpop.f32.mrf.mxu0
        %v552 = vadd.f32 %v335, %v551
        %v553 = vpop.f32.mrf.mxu0
        %v554 = vadd.f32 %v335, %v553
        %555 = vdwg.mxu0
        %v556 = vmul.f32 %v510, %v510
        %v557 = vmul.f32 %v524, %v524
        %v558 = vmul.f32 %v538, %v538
        %v559 = vmul.f32 %v552, %v552
        %v560 = vmul.f32 %v512, %v512
        %v561 = vmul.f32 %v526, %v526
        %v562 = vmul.f32 %v540, %v540
        %v563 = vmul.f32 %v554, %v554
        %v564 = vmul.f32 %v556, 0.035677407
        %v565 = vmul.f32 %v557, 0.035677407
        %v566 = vmul.f32 %v558, 0.035677407
        %v567 = vmul.f32 %v559, 0.035677407
        %v568 = vmul.f32 %v560, 0.035677407
        %v569 = vmul.f32 %v561, 0.035677407
        %v570 = vmul.f32 %v562, 0.035677407
        %v571 = vmul.f32 %v563, 0.035677407
        %v572 = vadd.f32 %v564, 0.7978846
        %v573 = vadd.f32 %v565, 0.7978846
        %v574 = vadd.f32 %v566, 0.7978846
        %v575 = vadd.f32 %v567, 0.7978846
        %v576 = vadd.f32 %v568, 0.7978846
        %v577 = vadd.f32 %v569, 0.7978846
        %v578 = vadd.f32 %v570, 0.7978846
        %v579 = vadd.f32 %v571, 0.7978846
        %v580 = vmul.f32 %v510, %v572
        %v581 = vmul.f32 %v524, %v573
        %v582 = vmul.f32 %v538, %v574
        %v583 = vmul.f32 %v552, %v575
        %v584 = vmul.f32 %v512, %v576
        %v585 = vmul.f32 %v526, %v577
        %v586 = vmul.f32 %v540, %v578
        %v587 = vmul.f32 %v554, %v579
        %v588 = vtanh.pop %v580
        %v589 = vtanh.pop %v581
        %v590 = vtanh.pop %v582
        %v591 = vtanh.pop %v583
        %v592 = vtanh.pop %v584
        %v593 = vtanh.pop %v585
        %v594 = vtanh.pop %v586
        %v595 = vtanh.pop %v587
        %v596 = vmul.f32 %v510, %v588
        %v597 = vmul.f32 %v524, %v589
        %v598 = vmul.f32 %v538, %v590
        %v599 = vmul.f32 %v552, %v591
        %v600 = vmul.f32 %v512, %v592
        %v601 = vmul.f32 %v526, %v593
        %v602 = vmul.f32 %v540, %v594
        %v603 = vmul.f32 %v554, %v595
        %v604 = vadd.f32 %v510, %v596
        %v605 = vadd.f32 %v524, %v597
        %v606 = vadd.f32 %v538, %v598
        %v607 = vadd.f32 %v552, %v599
        %v608 = vadd.f32 %v512, %v600
        %v609 = vadd.f32 %v526, %v601
        %v610 = vadd.f32 %v540, %v602
        %v611 = vadd.f32 %v554, %v603
        %v612 = vpack.c.bf16 %v608, %v604
        %v613 = vpack.c.bf16 %v609, %v605
        %v614 = vpack.c.bf16 %v610, %v606
        %v615 = vpack.c.bf16 %v611, %v607
        %v616 = vld [vmem:[#allocation8] sm:$0xf]
        %v617 = vld [vmem:[#allocation8 + $0x4] sm:$0xf]
        %v618 = vld [vmem:[#allocation8 + $0x8] sm:$0xf]
        %v619 = vld [vmem:[#allocation8 + $0xc] sm:$0xf]
        %v620 = vld [vmem:[#allocation8 + $0x10] sm:$0xf]
        %v621 = vld [vmem:[#allocation8 + $0x14] sm:$0xf]
        %v622 = vld [vmem:[#allocation8 + $0x18] sm:$0xf]
        %v623 = vld [vmem:[#allocation8 + $0x1c] sm:$0xf]
        %v624 = vld [vmem:[#allocation8 + $0x20] sm:$0xf]
        %v625 = vld [vmem:[#allocation8 + $0x24] sm:$0xf]
        %v626 = vld [vmem:[#allocation8 + $0x28] sm:$0xf]
        %v627 = vld [vmem:[#allocation8 + $0x2c] sm:$0xf]
        %v628 = vld [vmem:[#allocation8 + $0x30] sm:$0xf]
        %v629 = vld [vmem:[#allocation8 + $0x34] sm:$0xf]
        %v630 = vld [vmem:[#allocation8 + $0x38] sm:$0xf]
        %v631 = vld [vmem:[#allocation8 + $0x3c] sm:$0xf]
        %v632 = vld [vmem:[#allocation8 + $0x40] sm:$0xf]
        %v633 = vld [vmem:[#allocation8 + $0x44] sm:$0xf]
        %v634 = vld [vmem:[#allocation8 + $0x48] sm:$0xf]
        %v635 = vld [vmem:[#allocation8 + $0x4c] sm:$0xf]
        %v636 = vld [vmem:[#allocation8 + $0x50] sm:$0xf]
        %v637 = vld [vmem:[#allocation8 + $0x54] sm:$0xf]
        %v638 = vld [vmem:[#allocation8 + $0x58] sm:$0xf]
        %v639 = vld [vmem:[#allocation8 + $0x5c] sm:$0xf]
        %v640 = vld [vmem:[#allocation8 + $0x60] sm:$0xf]
        %v641 = vld [vmem:[#allocation8 + $0x64] sm:$0xf]
        %v642 = vld [vmem:[#allocation8 + $0x68] sm:$0xf]
        %v643 = vld [vmem:[#allocation8 + $0x6c] sm:$0xf]
        %v644 = vld [vmem:[#allocation8 + $0x70] sm:$0xf]
        %v645 = vld [vmem:[#allocation8 + $0x74] sm:$0xf]
        %v646 = vld [vmem:[#allocation8 + $0x78] sm:$0xf]
        %v647 = vld [vmem:[#allocation8 + $0x7c] sm:$0xf]
        %v648 = vld [vmem:[#allocation8 + $0x80] sm:$0xf]
        %v649 = vld [vmem:[#allocation8 + $0x84] sm:$0xf]
        %v650 = vld [vmem:[#allocation8 + $0x88] sm:$0xf]
        %v651 = vld [vmem:[#allocation8 + $0x8c] sm:$0xf]
        %v652 = vld [vmem:[#allocation8 + $0x90] sm:$0xf]
        %v653 = vld [vmem:[#allocation8 + $0x94] sm:$0xf]
        %v654 = vld [vmem:[#allocation8 + $0x98] sm:$0xf]
        %v655 = vld [vmem:[#allocation8 + $0x9c] sm:$0xf]
        %v656 = vld [vmem:[#allocation8 + $0xa0] sm:$0xf]
        %v657 = vld [vmem:[#allocation8 + $0xa4] sm:$0xf]
        %v658 = vld [vmem:[#allocation8 + $0xa8] sm:$0xf]
        %v659 = vld [vmem:[#allocation8 + $0xac] sm:$0xf]
        %v660 = vld [vmem:[#allocation8 + $0xb0] sm:$0xf]
        %v661 = vld [vmem:[#allocation8 + $0xb4] sm:$0xf]
        %v662 = vld [vmem:[#allocation8 + $0xb8] sm:$0xf]
        %v663 = vld [vmem:[#allocation8 + $0xbc] sm:$0xf]
        %v664 = vld [vmem:[#allocation8 + $0xc0] sm:$0xf]
        %v665 = vld [vmem:[#allocation8 + $0xc4] sm:$0xf]
        %v666 = vld [vmem:[#allocation8 + $0xc8] sm:$0xf]
        %v667 = vld [vmem:[#allocation8 + $0xcc] sm:$0xf]
        %v668 = vld [vmem:[#allocation8 + $0xd0] sm:$0xf]
        %v669 = vld [vmem:[#allocation8 + $0xd4] sm:$0xf]
        %v670 = vld [vmem:[#allocation8 + $0xd8] sm:$0xf]
        %v671 = vld [vmem:[#allocation8 + $0xdc] sm:$0xf]
        %v672 = vld [vmem:[#allocation8 + $0xe0] sm:$0xf]
        %v673 = vld [vmem:[#allocation8 + $0xe4] sm:$0xf]
        %v674 = vld [vmem:[#allocation8 + $0xe8] sm:$0xf]
        %v675 = vld [vmem:[#allocation8 + $0xec] sm:$0xf]
        %v676 = vld [vmem:[#allocation8 + $0xf0] sm:$0xf]
        %v677 = vld [vmem:[#allocation8 + $0xf4] sm:$0xf]
        %v678 = vld [vmem:[#allocation8 + $0xf8] sm:$0xf]
        %v679 = vld [vmem:[#allocation8 + $0xfc] sm:$0xf]
        %v680 = vld [vmem:[%s4] sm:$0x1]
        %v682 = vperm.slane %v680, 0
        %v748 = vunpack.c.l.b16 %v616
        %v749 = vunpack.c.l.b16 %v617
        %v750 = vunpack.c.l.b16 %v618
        %v751 = vunpack.c.l.b16 %v619
        %v752 = vunpack.c.l.b16 %v620
        %v753 = vunpack.c.l.b16 %v621
        %v754 = vunpack.c.l.b16 %v622
        %v755 = vunpack.c.l.b16 %v623
        %v756 = vunpack.c.l.b16 %v624
        %v757 = vunpack.c.l.b16 %v625
        %v758 = vunpack.c.l.b16 %v626
        %v759 = vunpack.c.l.b16 %v627
        %v760 = vunpack.c.l.b16 %v628
        %v761 = vunpack.c.l.b16 %v629
        %v762 = vunpack.c.l.b16 %v630
        %v763 = vunpack.c.l.b16 %v631
        %v764 = vunpack.c.l.b16 %v632
        %v765 = vunpack.c.l.b16 %v633
        %v766 = vunpack.c.l.b16 %v634
        %v767 = vunpack.c.l.b16 %v635
        %v768 = vunpack.c.l.b16 %v636
        %v769 = vunpack.c.l.b16 %v637
        %v770 = vunpack.c.l.b16 %v638
        %v771 = vunpack.c.l.b16 %v639
        %v772 = vunpack.c.l.b16 %v640
        %v773 = vunpack.c.l.b16 %v641
        %v774 = vunpack.c.l.b16 %v642
        %v775 = vunpack.c.l.b16 %v643
        %v776 = vunpack.c.l.b16 %v644
        %v777 = vunpack.c.l.b16 %v645
        %v778 = vunpack.c.l.b16 %v646
        %v779 = vunpack.c.l.b16 %v647
        %v780 = vunpack.c.l.b16 %v648
        %v781 = vunpack.c.l.b16 %v649
        %v782 = vunpack.c.l.b16 %v650
        %v783 = vunpack.c.l.b16 %v651
        %v784 = vunpack.c.l.b16 %v652
        %v785 = vunpack.c.l.b16 %v653
        %v786 = vunpack.c.l.b16 %v654
        %v787 = vunpack.c.l.b16 %v655
        %v788 = vunpack.c.l.b16 %v656
        %v789 = vunpack.c.l.b16 %v657
        %v790 = vunpack.c.l.b16 %v658
        %v791 = vunpack.c.l.b16 %v659
        %v792 = vunpack.c.l.b16 %v660
        %v793 = vunpack.c.l.b16 %v661
        %v794 = vunpack.c.l.b16 %v662
        %v795 = vunpack.c.l.b16 %v663
        %v796 = vunpack.c.l.b16 %v664
        %v797 = vunpack.c.l.b16 %v665
        %v798 = vunpack.c.l.b16 %v666
        %v799 = vunpack.c.l.b16 %v667
        %v800 = vunpack.c.l.b16 %v668
        %v801 = vunpack.c.l.b16 %v669
        %v802 = vunpack.c.l.b16 %v670
        %v803 = vunpack.c.l.b16 %v671
        %v804 = vunpack.c.l.b16 %v672
        %v805 = vunpack.c.l.b16 %v673
        %v806 = vunpack.c.l.b16 %v674
        %v807 = vunpack.c.l.b16 %v675
        %v808 = vunpack.c.l.b16 %v676
        %v809 = vunpack.c.l.b16 %v677
        %v810 = vunpack.c.l.b16 %v678
        %v811 = vunpack.c.l.b16 %v679
        %v812 = vpack.c.b16 %v749, %v748
        %v813 = vpack.c.b16 %v751, %v750
        %v814 = vpack.c.b16 %v753, %v752
        %v815 = vpack.c.b16 %v755, %v754
        %v816 = vpack.c.b16 %v757, %v756
        %v817 = vpack.c.b16 %v759, %v758
        %v818 = vpack.c.b16 %v761, %v760
        %v819 = vpack.c.b16 %v763, %v762
        %v820 = vpack.c.b16 %v765, %v764
        %v821 = vpack.c.b16 %v767, %v766
        %v822 = vpack.c.b16 %v769, %v768
        %v823 = vpack.c.b16 %v771, %v770
        %v824 = vpack.c.b16 %v773, %v772
        %v825 = vpack.c.b16 %v775, %v774
        %v826 = vpack.c.b16 %v777, %v776
        %v827 = vpack.c.b16 %v779, %v778
        %v828 = vpack.c.b16 %v781, %v780
        %v829 = vpack.c.b16 %v783, %v782
        %v830 = vpack.c.b16 %v785, %v784
        %v831 = vpack.c.b16 %v787, %v786
        %v832 = vpack.c.b16 %v789, %v788
        %v833 = vpack.c.b16 %v791, %v790
        %v834 = vpack.c.b16 %v793, %v792
        %v835 = vpack.c.b16 %v795, %v794
        %v836 = vpack.c.b16 %v797, %v796
        %v837 = vpack.c.b16 %v799, %v798
        %v838 = vpack.c.b16 %v801, %v800
        %v839 = vpack.c.b16 %v803, %v802
        %v840 = vpack.c.b16 %v805, %v804
        %v841 = vpack.c.b16 %v807, %v806
        %v842 = vpack.c.b16 %v809, %v808
        %v843 = vpack.c.b16 %v811, %v810
        %876 = vmatpush.bf16.msra.mxu0 %v819
        %877 = vmatpush.bf16.msra.mxu0 %v818
        %878 = vmatpush.bf16.msra.mxu0 %v817
        %879 = vmatpush.bf16.msra.mxu0 %v816
        %880 = vmatpush.bf16.msra.mxu0 %v815
        %881 = vmatpush.bf16.msra.mxu0 %v814
        %882 = vmatpush.bf16.msra.mxu0 %v813
        %883 = vmatpush.bf16.msra.mxu0 %v812
        %884 = vmatmul.bf16.gmra.mxu0 %v612
        %v885 = vpop.f32.mrf.mxu0
        %v886 = vadd.f32 %v682, %v885
        %v887 = vpop.f32.mrf.mxu0
        %v888 = vadd.f32 %v682, %v887
        %889 = vdwg.mxu0
        %890 = vmatpush.bf16.msra.mxu0 %v827
        %891 = vmatpush.bf16.msra.mxu0 %v826
        %892 = vmatpush.bf16.msra.mxu0 %v825
        %893 = vmatpush.bf16.msra.mxu0 %v824
        %894 = vmatpush.bf16.msra.mxu0 %v823
        %895 = vmatpush.bf16.msra.mxu0 %v822
        %896 = vmatpush.bf16.msra.mxu0 %v821
        %897 = vmatpush.bf16.msra.mxu0 %v820
        %898 = vmatmul.bf16.gmra.mxu0 %v613
        %v899 = vpop.f32.mrf.mxu0
        %v900 = vadd.f32 %v886, %v899
        %v901 = vpop.f32.mrf.mxu0
        %v902 = vadd.f32 %v888, %v901
        %903 = vdwg.mxu0
        %904 = vmatpush.bf16.msra.mxu0 %v835
        %905 = vmatpush.bf16.msra.mxu0 %v834
        %906 = vmatpush.bf16.msra.mxu0 %v833
        %907 = vmatpush.bf16.msra.mxu0 %v832
        %908 = vmatpush.bf16.msra.mxu0 %v831
        %909 = vmatpush.bf16.msra.mxu0 %v830
        %910 = vmatpush.bf16.msra.mxu0 %v829
        %911 = vmatpush.bf16.msra.mxu0 %v828
        %912 = vmatmul.bf16.gmra.mxu0 %v614
        %v913 = vpop.f32.mrf.mxu0
        %v914 = vadd.f32 %v900, %v913
        %v915 = vpop.f32.mrf.mxu0
        %v916 = vadd.f32 %v902, %v915
        %917 = vdwg.mxu0
        %918 = vmatpush.bf16.msra.mxu0 %v843
        %919 = vmatpush.bf16.msra.mxu0 %v842
        %920 = vmatpush.bf16.msra.mxu0 %v841
        %921 = vmatpush.bf16.msra.mxu0 %v840
        %922 = vmatpush.bf16.msra.mxu0 %v839
        %923 = vmatpush.bf16.msra.mxu0 %v838
        %924 = vmatpush.bf16.msra.mxu0 %v837
        %925 = vmatpush.bf16.msra.mxu0 %v836
        %926 = vmatmul.bf16.gmra.mxu0 %v615
        %v927 = vpop.f32.mrf.mxu0
        %v928 = vadd.f32 %v914, %v927
        %v929 = vpop.f32.mrf.mxu0
        %v930 = vadd.f32 %v916, %v929
        %931 = vdwg.mxu0
        %932 = vst [vmem:[%s292] sm:$0xff] %v928
        %933 = vst [vmem:[%s292 + $0x8] sm:$0xff] %v930
        %s934 = sand.u32 %s142, 1
        %s935 = scalar_lea.sflag [#allocation4], %s934
        %s936 = sand.u32 %s142, 1
        %s937 = smul.addr %s936, 16
        %s938 = scalar_lea.vmem [#allocation10], %s937
        // Predicated region
        $region57: #{mlp_pallas.1} parent=39 // pred_check
          %p939 = pneg %p152
        $region58: #{mlp_pallas.1} parent=39 // pred_check_branch
          %941 = sbr.rel (%p939) target = $region60
        $region59: #{mlp_pallas.1} parent=39 // pred_region
          %s942 = smul.u32 2, %s24
          %944 = vsyncadd %s935, 0
          %s945 = smul.addr %s942, 8
          %s946 = scalar_lea.hbm %s5, %s945
          %s947 = sshll.u32 %s938, 4
          %s948 = int_to_ptr.vmem [resolvable:$true] %s947
          %s949 = sshll.u32 %s946, 4
          %s950 = int_to_ptr.hbm [resolvable:$true] %s949
          %955 = dma.vmem_to_hbm [thread:$0]  %s948, 256, %s950, %s935, 128, 128, 8
        $region60: #{mlp_pallas.1} parent=39 // pred_fallthru
          _
      $region40: #{mlp_pallas.1} parent=5 // pred_fallthru
        _
      %p956 = scmp.le.s32.totalorder 2, %s19
      // Predicated region
      $region61: #{mlp_pallas.1} parent=5 // pred_check
        %p957 = pneg %p956
      $region62: #{mlp_pallas.1} parent=5 // pred_check_branch
        %959 = sbr.rel (%p957) target = $region64
      $region63: #{mlp_pallas.1} parent=5 // pred_region
        %s960 = ssub.s32 %s19, 2
        // Predicated region
        $region65: #{mlp_pallas.1} parent=63 // pred_check
          %p961 = pneg %p158
        $region66: #{mlp_pallas.1} parent=63 // pred_check_branch
          %963 = sbr.rel (%p961) target = $region68
        $region67: #{mlp_pallas.1} parent=63 // pred_region
          %s964 = sand.u32 %s143, 1
          %s965 = scalar_lea.sflag [#allocation4], %s964
          %s966 = sand.u32 %s143, 1
          %s967 = smul.addr %s966, 16
          %s968 = scalar_lea.vmem [#allocation10], %s967
          %970 = dma.done %s965, 256
        $region68: #{mlp_pallas.1} parent=63 // pred_fallthru
          _
      $region64: #{mlp_pallas.1} parent=5 // pred_fallthru
        _
    $region6: #{mlp_pallas.1} parent=1 // loop_footer
      %s23 = sadd.s32 1, %s19
    $region7: #{mlp_pallas.1} parent=1 // loop_footer_branch
      %18 = sbr.rel target = $region3
    $region8: #{mlp_pallas.1} parent=1 // loop_exit
      _
    %971 = vsyncpa [#allocation3], 1
    %s972 = scalar_lea.sflag [#allocation3], 1
    %973 = vsyncpa %s972, 1
    %974 = vsyncpa [#allocation6], 1
    %975 = vsyncpa [#allocation9], 1
    %976 = vsyncpa [#allocation4], 1
    %s977 = scalar_lea.sflag [#allocation4], 1
    %978 = vsyncpa %s977, 1

</llo_original>
